<compile_context>
chip_gen: v7x
topology: tpu7x:2x2x1
jax: 0.10.0
libtpu: 0.0.40
codegen_flags: <defaults>
</compile_context>

<pallas_src>
import functools

import jax
import jax.numpy as jnp
from jax.experimental import pallas as pl
from jax.experimental.pallas import tpu as pltpu

KPAD = 128      # im2col contraction dim (3*3*Cin = 27) zero-padded to a full lane tile
CLS_PAD = 128   # classifier output columns padded 10 -> 128 (unmasked lane-dense stores)
N_PAD = 8       # classifier output rows padded to a full sublane tile


def vgg_fused_kernel(patch_ref, wc_ref, bc_ref, g_ref, bt_ref, wl_ref, bl_ref,
                     o_ref, feat_ref, flat_ref):
    """Fused Conv3x3(pad=1) + BatchNorm2d(train) + ReLU + AvgPool(1,1) + flatten + Linear.

    patch_ref : (HW*N, KPAD)      im2col patches, rows ordered (h, w, n), K zero-padded
    wc_ref    : (KPAD, Cout)      conv weight reshaped (kh,kw,cin)->K rows, zero-padded
    bc/g/bt   : (1, Cout)         conv bias, BN gamma, BN beta
    wl_ref    : (HW*Cout, CLS_PAD) classifier weight, rows pre-permuted to NHWC order
    bl_ref    : (1, CLS_PAD)      classifier bias (padded)
    o_ref     : (N_PAD, CLS_PAD)  padded logits (lane/sublane dense)
    feat_ref  : (HW*N, Cout)      VMEM scratch (post-BN/ReLU features)
    flat_ref  : (N_PAD, HW*Cout)  VMEM scratch (flattened features, padded batch)
    """
    M = patch_ref.shape[0]                      # N*H*W
    Cout = wc_ref.shape[1]
    HWC = flat_ref.shape[1]
    HW = HWC // Cout
    N = M // HW

    # --- Conv2d(3x3, padding=1) as ONE im2col GEMM (single MXU pass) --------------
    acc = jnp.dot(patch_ref[...], wc_ref[...], preferred_element_type=jnp.float32)
    acc = acc + bc_ref[...]                     # conv bias

    # --- BatchNorm2d (training mode, biased batch stats) folded into one FMA ------
    inv_m = 1.0 / M
    mean = jnp.sum(acc, axis=0, keepdims=True) * inv_m          # (1, Cout)
    ex2 = jnp.sum(acc * acc, axis=0, keepdims=True) * inv_m     # f32 accumulation
    var = ex2 - mean * mean
    scale = g_ref[...] * jax.lax.rsqrt(var + 1e-5)              # rsqrt -> EUP slot
    shift = bt_ref[...] - mean * scale
    # ReLU; AvgPool2d(kernel_size=1, stride=1) is the identity.
    feat_ref[...] = jnp.maximum(acc * scale + shift, 0.0)

    # --- Flatten to (N, HW*Cout) in NHWC order -------------------------------------
    # Classifier weight rows were pre-permuted to NHWC order, so torch's NCHW
    # `out.view(N, -1)` is reproduced without any in-kernel transpose.  Rows of
    # feat are (h, w, n)-ordered, so each spatial position p is a contiguous
    # (N, Cout) slab -> pure static slab copies via refs (no vector reshape).
    flat_ref[...] = jnp.zeros_like(flat_ref)    # zero the padded batch rows
    for p in range(HW):                         # HW = 8, statically unrolled
        flat_ref[pl.ds(0, N), pl.ds(p * Cout, Cout)] = feat_ref[pl.ds(p * N, N), :]

    # --- classifier Linear(512, 10), padded to a lane/sublane-dense (8,128) slab ---
    o_ref[...] = (jnp.dot(flat_ref[...], wl_ref[...],
                          preferred_element_type=jnp.float32)
                  + bl_ref[...]).astype(o_ref.dtype)


def prepare_params(params):
    """One-time, host-side parameter packing (outside the hot path)."""
    w_conv, b_conv, gamma, beta, w_lin, b_lin = params
    kh, kw, cin, cout = w_conv.shape
    k = kh * kw * cin
    wc = jnp.pad(w_conv.reshape(k, cout), ((0, KPAD - k), (0, 0)))       # (KPAD, Cout)

    hw = w_lin.shape[0] // cout
    ncls = w_lin.shape[1]
    # torch flattens NCHW: flat[:, c*HW + p].  Permute rows to NHWC order
    # (p*Cout + c) so the kernel never transposes the feature map.
    wl = w_lin.reshape(cout, hw, ncls).transpose(1, 0, 2).reshape(hw * cout, ncls)
    wl = jnp.pad(wl, ((0, 0), (0, CLS_PAD - ncls)))                      # (HW*Cout, 128)
    bl = jnp.pad(b_lin, (0, CLS_PAD - ncls)).reshape(1, CLS_PAD)
    return (wc, b_conv.reshape(1, cout), gamma.reshape(1, cout),
            beta.reshape(1, cout), wl, bl)


@functools.partial(jax.jit, static_argnames=("num_classes",))
def vgg_forward(x_nchw, prepped, *, num_classes=10):
    wc, bc, g, bt, wl, bl = prepped
    N, Cin, H, W = x_nchw.shape
    Cout = wc.shape[1]
    HW = H * W
    M = HW * N
    HWC = HW * Cout

    # NCHW -> NHWC, zero-pad, im2col.  Rows ordered (h, w, n) so the in-kernel
    # flatten is contiguous slab copies; columns ordered (kh, kw, cin) to match
    # w_conv.reshape(9*Cin, Cout).  All of this fuses inside the surrounding jit.
    x_nhwc = jnp.transpose(x_nchw, (0, 2, 3, 1))
    xp = jnp.pad(x_nhwc, ((0, 0), (1, 1), (1, 1), (0, 0)))
    taps = [xp[:, kh:kh + H, kw:kw + W, :] for kh in range(3) for kw in range(3)]
    patch = jnp.concatenate(
        [jnp.transpose(t, (1, 2, 0, 3)).reshape(M, Cin) for t in taps], axis=-1)
    patch = jnp.pad(patch, ((0, 0), (0, KPAD - patch.shape[1])))          # (M, KPAD)

    vmem = pl.BlockSpec(memory_space=pltpu.MemorySpace.VMEM)
    out_pad = pl.pallas_call(
        vgg_fused_kernel,
        out_shape=jax.ShapeDtypeStruct((N_PAD, CLS_PAD), jnp.float32),
        in_specs=[vmem] * 7,
        out_specs=vmem,
        scratch_shapes=[pltpu.VMEM((M, Cout), jnp.float32),
                        pltpu.VMEM((N_PAD, HWC), jnp.float32)],
    )(patch, wc, bc, g, bt, wl, bl)
    return out_pad[:N, :num_classes]


def reference_forward(x_nchw, params):
    """Pure-JAX reference of the same forward pass (for a correctness check)."""
    w_conv, b_conv, gamma, beta, w_lin, b_lin = params
    x = jnp.transpose(x_nchw, (0, 2, 3, 1))
    y = jax.lax.conv_general_dilated(
        x, w_conv, window_strides=(1, 1), padding=((1, 1), (1, 1)),
        dimension_numbers=("NHWC", "HWIO", "NHWC"))
    y = y + b_conv
    mean = jnp.mean(y, axis=(0, 1, 2), keepdims=True)
    var = jnp.mean((y - mean) ** 2, axis=(0, 1, 2), keepdims=True)
    y = (y - mean) * jax.lax.rsqrt(var + 1e-5) * gamma + beta
    y = jnp.maximum(y, 0.0)
    y_nchw = jnp.transpose(y, (0, 3, 1, 2))
    flat = y_nchw.reshape(y_nchw.shape[0], -1)
    return flat @ w_lin + b_lin


if __name__ == "__main__":
    # 64 * H * W must equal 512 for the classifier Linear(512, 10)  ->  H=4, W=2.
    N, Cin, H, W, Cout, NUM_CLASSES = 2, 3, 4, 2, 64, 10

    key = jax.random.PRNGKey(0)
    kx, kw, kb, kg, kbt, klw, klb = jax.random.split(key, 7)
    x = jax.random.normal(kx, (N, Cin, H, W), jnp.float32)
    params = (
        0.10 * jax.random.normal(kw, (3, 3, Cin, Cout), jnp.float32),   # conv weight (HWIO)
        0.10 * jax.random.normal(kb, (Cout,), jnp.float32),             # conv bias
        1.0 + 0.10 * jax.random.normal(kg, (Cout,), jnp.float32),       # BN gamma
        0.10 * jax.random.normal(kbt, (Cout,), jnp.float32),            # BN beta
        0.05 * jax.random.normal(klw, (Cout * H * W, NUM_CLASSES), jnp.float32),  # linear W^T
        0.05 * jax.random.normal(klb, (NUM_CLASSES,), jnp.float32),     # linear bias
    )

    prepped = prepare_params(params)
    out = jax.block_until_ready(vgg_forward(x, prepped, num_classes=NUM_CLASSES))
    ref = jax.block_until_ready(reference_forward(x, params))

    assert out.shape == (N, NUM_CLASSES), out.shape
    err = float(jnp.max(jnp.abs(out - ref)))
    assert err < 1e-2, f"mismatch vs pure-JAX reference: max abs err = {err}"
    print("KERNEL_OK")
</pallas_src>

<mosaic_0001>
module attributes {stable_mosaic.version = 11 : i64} {
  func.func @vgg_fused_kernel(%arg0: memref<16x128xf32, #tpu.memory_space<vmem>>, %arg1: memref<128x64xf32, #tpu.memory_space<vmem>>, %arg2: memref<1x64xf32, #tpu.memory_space<vmem>>, %arg3: memref<1x64xf32, #tpu.memory_space<vmem>>, %arg4: memref<1x64xf32, #tpu.memory_space<vmem>>, %arg5: memref<512x128xf32, #tpu.memory_space<vmem>>, %arg6: memref<1x128xf32, #tpu.memory_space<vmem>>, %arg7: memref<8x128xf32, #tpu.memory_space<vmem>>, %arg8: memref<16x64xf32, #tpu.memory_space<vmem>>, %arg9: memref<8x512xf32, #tpu.memory_space<vmem>>) attributes {dimension_semantics = [], scalar_prefetch = 0 : i64, scratch_operands = 2 : i64, tpu.core_type = #tpu.core_type<tc>} {
    %c0 = arith.constant 0 : index
    %c0_0 = arith.constant 0 : index
    %0 = vector.load %arg0[%c0, %c0_0] : memref<16x128xf32, #tpu.memory_space<vmem>>, vector<16x128xf32>
    %c0_1 = arith.constant 0 : index
    %c0_2 = arith.constant 0 : index
    %1 = vector.load %arg1[%c0_1, %c0_2] : memref<128x64xf32, #tpu.memory_space<vmem>>, vector<128x64xf32>
    %cst = arith.constant dense<0.000000e+00> : vector<16x64xf32>
    %2 = tpu.matmul %0, %1, %cst {dimension_numbers = #tpu.dot_dimension_numbers<[1], [0], [0], [1], [0, 0, 1, 1], [], []>} : vector<16x128xf32>, vector<128x64xf32>, vector<16x64xf32> -> vector<16x64xf32>
    %c0_3 = arith.constant 0 : index
    %c0_4 = arith.constant 0 : index
    %3 = vector.load %arg2[%c0_3, %c0_4] : memref<1x64xf32, #tpu.memory_space<vmem>>, vector<1x64xf32>
    %4 = vector.broadcast %3 : vector<1x64xf32> to vector<16x64xf32>
    %5 = arith.addf %2, %4 : vector<16x64xf32>
    %cst_5 = arith.constant dense<0.000000e+00> : vector<64xf32>
    %6 = vector.multi_reduction <add>, %5, %cst_5 [0] : vector<16x64xf32> to vector<64xf32>
    %7 = vector.shape_cast %6 : vector<64xf32> to vector<1x64xf32>
    %cst_6 = arith.constant 6.250000e-02 : f32
    %8 = vector.broadcast %cst_6 : f32 to vector<1x64xf32>
    %9 = arith.mulf %7, %8 : vector<1x64xf32>
    %10 = arith.mulf %5, %5 : vector<16x64xf32>
    %cst_7 = arith.constant dense<0.000000e+00> : vector<64xf32>
    %11 = vector.multi_reduction <add>, %10, %cst_7 [0] : vector<16x64xf32> to vector<64xf32>
    %12 = vector.shape_cast %11 : vector<64xf32> to vector<1x64xf32>
    %cst_8 = arith.constant 6.250000e-02 : f32
    %13 = vector.broadcast %cst_8 : f32 to vector<1x64xf32>
    %14 = arith.mulf %12, %13 : vector<1x64xf32>
    %15 = arith.mulf %9, %9 : vector<1x64xf32>
    %16 = arith.subf %14, %15 : vector<1x64xf32>
    %c0_9 = arith.constant 0 : index
    %c0_10 = arith.constant 0 : index
    %17 = vector.load %arg3[%c0_9, %c0_10] : memref<1x64xf32, #tpu.memory_space<vmem>>, vector<1x64xf32>
    %cst_11 = arith.constant 9.99999974E-6 : f32
    %18 = vector.broadcast %cst_11 : f32 to vector<1x64xf32>
    %19 = arith.addf %16, %18 : vector<1x64xf32>
    %20 = math.rsqrt %19 : vector<1x64xf32>
    %21 = arith.mulf %17, %20 : vector<1x64xf32>
    %c0_12 = arith.constant 0 : index
    %c0_13 = arith.constant 0 : index
    %22 = vector.load %arg4[%c0_12, %c0_13] : memref<1x64xf32, #tpu.memory_space<vmem>>, vector<1x64xf32>
    %23 = arith.mulf %9, %21 : vector<1x64xf32>
    %24 = arith.subf %22, %23 : vector<1x64xf32>
    %25 = vector.broadcast %21 : vector<1x64xf32> to vector<16x64xf32>
    %26 = arith.mulf %5, %25 : vector<16x64xf32>
    %27 = vector.broadcast %24 : vector<1x64xf32> to vector<16x64xf32>
    %28 = arith.addf %26, %27 : vector<16x64xf32>
    %cst_14 = arith.constant 0.000000e+00 : f32
    %29 = vector.broadcast %cst_14 : f32 to vector<16x64xf32>
    %30 = arith.maximumf %28, %29 : vector<16x64xf32>
    %c0_15 = arith.constant 0 : index
    %c0_16 = arith.constant 0 : index
    %31 = vector.load %arg8[%c0_15, %c0_16] : memref<16x64xf32, #tpu.memory_space<vmem>>, vector<16x64xf32>
    tpu.vector_store %arg8[%c0_15, %c0_16], %30 {strides = array<i32>} : memref<16x64xf32, #tpu.memory_space<vmem>>, vector<16x64xf32>,
    %cst_17 = arith.constant 0.000000e+00 : f32
    %32 = vector.broadcast %cst_17 : f32 to vector<8x512xf32>
    %c0_18 = arith.constant 0 : index
    %c0_19 = arith.constant 0 : index
    %33 = vector.load %arg9[%c0_18, %c0_19] : memref<8x512xf32, #tpu.memory_space<vmem>>, vector<8x512xf32>
    tpu.vector_store %arg9[%c0_18, %c0_19], %32 {strides = array<i32>} : memref<8x512xf32, #tpu.memory_space<vmem>>, vector<8x512xf32>,
    %c0_20 = arith.constant 0 : index
    %c0_21 = arith.constant 0 : index
    %34 = vector.load %arg8[%c0_20, %c0_21] : memref<16x64xf32, #tpu.memory_space<vmem>>, vector<2x64xf32>
    %c0_22 = arith.constant 0 : index
    %c0_23 = arith.constant 0 : index
    %35 = vector.load %arg9[%c0_22, %c0_23] : memref<8x512xf32, #tpu.memory_space<vmem>>, vector<2x64xf32>
    tpu.vector_store %arg9[%c0_22, %c0_23], %34 {strides = array<i32>} : memref<8x512xf32, #tpu.memory_space<vmem>>, vector<2x64xf32>,
    %c2 = arith.constant 2 : index
    %c0_24 = arith.constant 0 : index
    %36 = vector.load %arg8[%c2, %c0_24] : memref<16x64xf32, #tpu.memory_space<vmem>>, vector<2x64xf32>
    %c0_25 = arith.constant 0 : index
    %c64 = arith.constant 64 : index
    %37 = vector.load %arg9[%c0_25, %c64] : memref<8x512xf32, #tpu.memory_space<vmem>>, vector<2x64xf32>
    tpu.vector_store %arg9[%c0_25, %c64], %36 {strides = array<i32>} : memref<8x512xf32, #tpu.memory_space<vmem>>, vector<2x64xf32>,
    %c4 = arith.constant 4 : index
    %c0_26 = arith.constant 0 : index
    %38 = vector.load %arg8[%c4, %c0_26] : memref<16x64xf32, #tpu.memory_space<vmem>>, vector<2x64xf32>
    %c0_27 = arith.constant 0 : index
    %c128 = arith.constant 128 : index
    %39 = vector.load %arg9[%c0_27, %c128] : memref<8x512xf32, #tpu.memory_space<vmem>>, vector<2x64xf32>
    tpu.vector_store %arg9[%c0_27, %c128], %38 {strides = array<i32>} : memref<8x512xf32, #tpu.memory_space<vmem>>, vector<2x64xf32>,
    %c6 = arith.constant 6 : index
    %c0_28 = arith.constant 0 : index
    %40 = vector.load %arg8[%c6, %c0_28] : memref<16x64xf32, #tpu.memory_space<vmem>>, vector<2x64xf32>
    %c0_29 = arith.constant 0 : index
    %c192 = arith.constant 192 : index
    %41 = vector.load %arg9[%c0_29, %c192] : memref<8x512xf32, #tpu.memory_space<vmem>>, vector<2x64xf32>
    tpu.vector_store %arg9[%c0_29, %c192], %40 {strides = array<i32>} : memref<8x512xf32, #tpu.memory_space<vmem>>, vector<2x64xf32>,
    %c8 = arith.constant 8 : index
    %c0_30 = arith.constant 0 : index
    %42 = vector.load %arg8[%c8, %c0_30] : memref<16x64xf32, #tpu.memory_space<vmem>>, vector<2x64xf32>
    %c0_31 = arith.constant 0 : index
    %c256 = arith.constant 256 : index
    %43 = vector.load %arg9[%c0_31, %c256] : memref<8x512xf32, #tpu.memory_space<vmem>>, vector<2x64xf32>
    tpu.vector_store %arg9[%c0_31, %c256], %42 {strides = array<i32>} : memref<8x512xf32, #tpu.memory_space<vmem>>, vector<2x64xf32>,
    %c10 = arith.constant 10 : index
    %c0_32 = arith.constant 0 : index
    %44 = vector.load %arg8[%c10, %c0_32] : memref<16x64xf32, #tpu.memory_space<vmem>>, vector<2x64xf32>
    %c0_33 = arith.constant 0 : index
    %c320 = arith.constant 320 : index
    %45 = vector.load %arg9[%c0_33, %c320] : memref<8x512xf32, #tpu.memory_space<vmem>>, vector<2x64xf32>
    tpu.vector_store %arg9[%c0_33, %c320], %44 {strides = array<i32>} : memref<8x512xf32, #tpu.memory_space<vmem>>, vector<2x64xf32>,
    %c12 = arith.constant 12 : index
    %c0_34 = arith.constant 0 : index
    %46 = vector.load %arg8[%c12, %c0_34] : memref<16x64xf32, #tpu.memory_space<vmem>>, vector<2x64xf32>
    %c0_35 = arith.constant 0 : index
    %c384 = arith.constant 384 : index
    %47 = vector.load %arg9[%c0_35, %c384] : memref<8x512xf32, #tpu.memory_space<vmem>>, vector<2x64xf32>
    tpu.vector_store %arg9[%c0_35, %c384], %46 {strides = array<i32>} : memref<8x512xf32, #tpu.memory_space<vmem>>, vector<2x64xf32>,
    %c14 = arith.constant 14 : index
    %c0_36 = arith.constant 0 : index
    %48 = vector.load %arg8[%c14, %c0_36] : memref<16x64xf32, #tpu.memory_space<vmem>>, vector<2x64xf32>
    %c0_37 = arith.constant 0 : index
    %c448 = arith.constant 448 : index
    %49 = vector.load %arg9[%c0_37, %c448] : memref<8x512xf32, #tpu.memory_space<vmem>>, vector<2x64xf32>
    tpu.vector_store %arg9[%c0_37, %c448], %48 {strides = array<i32>} : memref<8x512xf32, #tpu.memory_space<vmem>>, vector<2x64xf32>,
    %c0_38 = arith.constant 0 : index
    %c0_39 = arith.constant 0 : index
    %50 = vector.load %arg9[%c0_38, %c0_39] : memref<8x512xf32, #tpu.memory_space<vmem>>, vector<8x512xf32>
    %c0_40 = arith.constant 0 : index
    %c0_41 = arith.constant 0 : index
    %51 = vector.load %arg5[%c0_40, %c0_41] : memref<512x128xf32, #tpu.memory_space<vmem>>, vector<512x128xf32>
    %cst_42 = arith.constant dense<0.000000e+00> : vector<8x128xf32>
    %52 = tpu.matmul %50, %51, %cst_42 {dimension_numbers = #tpu.dot_dimension_numbers<[1], [0], [0], [1], [0, 0, 1, 1], [], []>} : vector<8x512xf32>, vector<512x128xf32>, vector<8x128xf32> -> vector<8x128xf32>
    %c0_43 = arith.constant 0 : index
    %c0_44 = arith.constant 0 : index
    %53 = vector.load %arg6[%c0_43, %c0_44] : memref<1x128xf32, #tpu.memory_space<vmem>>, vector<1x128xf32>
    %54 = vector.broadcast %53 : vector<1x128xf32> to vector<8x128xf32>
    %55 = arith.addf %52, %54 : vector<8x128xf32>
    %c0_45 = arith.constant 0 : index
    %c0_46 = arith.constant 0 : index
    %56 = vector.load %arg7[%c0_45, %c0_46] : memref<8x128xf32, #tpu.memory_space<vmem>>, vector<8x128xf32>
    tpu.vector_store %arg7[%c0_45, %c0_46], %55 {strides = array<i32>} : memref<8x128xf32, #tpu.memory_space<vmem>>, vector<8x128xf32>,
    return
  }
}

</mosaic_0001>

<llo_original>
// kernel: vgg_forward.1
$region0: #{vgg_forward.1}
  #allocation0 [shape = 'u32[]', space=smem, size = 0x4, offset = 0x4, fixed_abs, tag = 'smem constant byte address 0x4 - core index']
  #allocation1 [shape = 'u32[144,128]{1,0:T(1,128)}', space=vmem, size = 0x12000, scoped, tag = 'internal scratch']
  #allocation2 [shape = 'f32[16,64]{1,0:T(8,128)}', space=vmem, size = 0x2000, scoped, tag = 'scratch operand']
  #allocation3 [shape = 'f32[8,512]{1,0:T(8,128)}', space=vmem, size = 0x4000, scoped, tag = 'scratch operand']
  %s0 = inlined_call_operand.vmem [shape: f32[16,128], index: 0, kind: input, shape index: {}]
  %s1 = inlined_call_operand.vmem [shape: f32[128,64], index: 1, kind: input, shape index: {}]
  %s2 = inlined_call_operand.vmem [shape: f32[1,64], index: 2, kind: input, shape index: {}]
  %s3 = inlined_call_operand.vmem [shape: f32[1,64], index: 3, kind: input, shape index: {}]
  %s4 = inlined_call_operand.vmem [shape: f32[1,64], index: 4, kind: input, shape index: {}]
  %s5 = inlined_call_operand.vmem [shape: f32[512,128], index: 5, kind: input, shape index: {}]
  %s6 = inlined_call_operand.vmem [shape: f32[1,128], index: 6, kind: input, shape index: {}]
  %s7 = inlined_call_operand.vmem [shape: f32[8,128], index: 7, kind: output, shape index: {}]
  %s8 = sld [smem:[#allocation0]]
  $region38: #{vgg_forward.1} parent=0
    _
  %s10 = ssub.s32 1, %s8
  %s11 = scalar_select 0, %s10, %s8
  // Predicated region
  $region2: #{vgg_forward.1} parent=0 // pred_check
    _
  $region3: #{vgg_forward.1} parent=0 // pred_check_branch
    %13 = sbr.rel (0) target = $region5
  $region4: #{vgg_forward.1} parent=0 // pred_region
    _
  $region5: #{vgg_forward.1} parent=0 // pred_fallthru
    _
  // Predicated region
  $region6: #{vgg_forward.1} parent=0 // pred_check
    _
  $region7: #{vgg_forward.1} parent=0 // pred_check_branch
    %15 = sbr.rel (0) target = $region9
  $region8: #{vgg_forward.1} parent=0 // pred_region
    _
  $region9: #{vgg_forward.1} parent=0 // pred_fallthru
    _
  // Predicated region
  $region10: #{vgg_forward.1} parent=0 // pred_check
    _
  $region11: #{vgg_forward.1} parent=0 // pred_check_branch
    %17 = sbr.rel (0) target = $region13
  $region12: #{vgg_forward.1} parent=0 // pred_region
    _
  $region13: #{vgg_forward.1} parent=0 // pred_fallthru
    _
  // Predicated region
  $region14: #{vgg_forward.1} parent=0 // pred_check
    _
  $region15: #{vgg_forward.1} parent=0 // pred_check_branch
    %19 = sbr.rel (0) target = $region17
  $region16: #{vgg_forward.1} parent=0 // pred_region
    _
  $region17: #{vgg_forward.1} parent=0 // pred_fallthru
    _
  // Predicated region
  $region18: #{vgg_forward.1} parent=0 // pred_check
    _
  $region19: #{vgg_forward.1} parent=0 // pred_check_branch
    %21 = sbr.rel (0) target = $region21
  $region20: #{vgg_forward.1} parent=0 // pred_region
    _
  $region21: #{vgg_forward.1} parent=0 // pred_fallthru
    _
  // Predicated region
  $region22: #{vgg_forward.1} parent=0 // pred_check
    _
  $region23: #{vgg_forward.1} parent=0 // pred_check_branch
    %23 = sbr.rel (0) target = $region25
  $region24: #{vgg_forward.1} parent=0 // pred_region
    _
  $region25: #{vgg_forward.1} parent=0 // pred_fallthru
    _
  // Predicated region
  $region26: #{vgg_forward.1} parent=0 // pred_check
    _
  $region27: #{vgg_forward.1} parent=0 // pred_check_branch
    %25 = sbr.rel (0) target = $region29
  $region28: #{vgg_forward.1} parent=0 // pred_region
    _
  $region29: #{vgg_forward.1} parent=0 // pred_fallthru
    _
  %v26 = vld [vmem:[%s0] sm:$0xff]
  %v27 = vld [vmem:[%s0 + $0x8] sm:$0xff]
  %v28 = vld [vmem:[%s1] sm:$0xff]
  %v29 = vld [vmem:[%s1 + $0x8] sm:$0xff]
  %v30 = vld [vmem:[%s1 + $0x10] sm:$0xff]
  %v31 = vld [vmem:[%s1 + $0x18] sm:$0xff]
  %v32 = vld [vmem:[%s1 + $0x20] sm:$0xff]
  %v33 = vld [vmem:[%s1 + $0x28] sm:$0xff]
  %v34 = vld [vmem:[%s1 + $0x30] sm:$0xff]
  %v35 = vld [vmem:[%s1 + $0x38] sm:$0xff]
  %v36 = vld [vmem:[%s1 + $0x40] sm:$0xff]
  %v37 = vld [vmem:[%s1 + $0x48] sm:$0xff]
  %v38 = vld [vmem:[%s1 + $0x50] sm:$0xff]
  %v39 = vld [vmem:[%s1 + $0x58] sm:$0xff]
  %v40 = vld [vmem:[%s1 + $0x60] sm:$0xff]
  %v41 = vld [vmem:[%s1 + $0x68] sm:$0xff]
  %v42 = vld [vmem:[%s1 + $0x70] sm:$0xff]
  %v43 = vld [vmem:[%s1 + $0x78] sm:$0xff]
  %v44 = vld [vmem:[%s2] sm:$0x1]
  %v46 = vlaneseq
  %v47 = vshrl.u32 %v46, 7
  %v48 = vsub.s32 0, %v47
  %v49 = vrot.slane %v44, %v48
  %51 = vmatprep.subr.mxu0 0.0
  %52 = vmatpush1.msra.mxu0 %v28
  %53 = vmatprep.subr.mxu0 0.0
  %54 = vmatpush1.msra.mxu0 %v29
  %55 = vmatprep.subr.mxu0 0.0
  %56 = vmatpush1.msra.mxu0 %v30
  %57 = vmatprep.subr.mxu0 0.0
  %58 = vmatpush1.msra.mxu0 %v31
  %59 = vmatprep.subr.mxu0 0.0
  %60 = vmatpush1.msra.mxu0 %v32
  %61 = vmatprep.subr.mxu0 0.0
  %62 = vmatpush1.msra.mxu0 %v33
  %63 = vmatprep.subr.mxu0 0.0
  %64 = vmatpush1.msra.mxu0 %v34
  %65 = vmatprep.subr.mxu0 0.0
  %66 = vmatpush1.msra.mxu0 %v35
  %67 = vmatprep.subr.mxu0 0.0
  %68 = vmatpush1.msra.mxu0 %v36
  %69 = vmatprep.subr.mxu0 0.0
  %70 = vmatpush1.msra.mxu0 %v37
  %71 = vmatprep.subr.mxu0 0.0
  %72 = vmatpush1.msra.mxu0 %v38
  %73 = vmatprep.subr.mxu0 0.0
  %74 = vmatpush1.msra.mxu0 %v39
  %75 = vmatprep.subr.mxu0 0.0
  %76 = vmatpush1.msra.mxu0 %v40
  %77 = vmatprep.subr.mxu0 0.0
  %78 = vmatpush1.msra.mxu0 %v41
  %79 = vmatprep.subr.mxu0 0.0
  %80 = vmatpush1.msra.mxu0 %v42
  %81 = vmatprep.subr.mxu0 0.0
  %82 = vmatpush1.msra.mxu0 %v43
  %83 = vmatprep.subr.mxu0 0.0
  %84 = vmatpush1.msra.mxu0 0.0
  %85 = vmatprep.subr.mxu0 0.0
  %86 = vmatpush1.msra.mxu0 0.0
  %87 = vmatprep.subr.mxu0 0.0
  %88 = vmatpush1.msra.mxu0 0.0
  %89 = vmatprep.subr.mxu0 0.0
  %90 = vmatpush1.msra.mxu0 0.0
  %91 = vmatprep.subr.mxu0 0.0
  %92 = vmatpush1.msra.mxu0 0.0
  %93 = vmatprep.subr.mxu0 0.0
  %94 = vmatpush1.msra.mxu0 0.0
  %95 = vmatprep.subr.mxu0 0.0
  %96 = vmatpush1.msra.mxu0 0.0
  %97 = vmatprep.subr.mxu0 0.0
  %98 = vmatpush1.msra.mxu0 0.0
  %99 = vmatprep.subr.mxu0 0.0
  %100 = vmatpush1.msra.mxu0 0.0
  %101 = vmatprep.subr.mxu0 0.0
  %102 = vmatpush1.msra.mxu0 0.0
  %103 = vmatprep.subr.mxu0 0.0
  %104 = vmatpush1.msra.mxu0 0.0
  %105 = vmatprep.subr.mxu0 0.0
  %106 = vmatpush1.msra.mxu0 0.0
  %107 = vmatprep.subr.mxu0 0.0
  %108 = vmatpush1.msra.mxu0 0.0
  %109 = vmatprep.subr.mxu0 0.0
  %110 = vmatpush1.msra.mxu0 0.0
  %111 = vmatprep.subr.mxu0 0.0
  %112 = vmatpush1.msra.mxu0 0.0
  %113 = vmatprep.subr.mxu0 0.0
  %114 = vmatpush1.msra.mxu0 0.0
  %115 = vmatprep.mubr.f32.mxu0 0.0
  %116 = vmatmul.mubr.f32.gmra.mrb[0].mxu0 %v26
  %v117 = vpop.f32.mrb[0].mxu0
  %v118 = vadd.f32 %v49, %v117
  %v119 = vpop.f32.mrb[0].mxu0
  %120 = vmatprep.mubr.f32.mxu0 0.0
  %121 = vmatmul.mubr.f32.gmra.mrb[0].mxu0 %v27
  %v122 = vpop.f32.mrb[0].mxu0
  %v123 = vadd.f32 %v49, %v122
  %v124 = vpop.f32.mrb[0].mxu0
  %125 = vdwg.mxu0
  %vm126 = vcmask 523264
  %v127 = vsel %vm126, %v118, 0.0
  %v128 = vsel %vm126, %v123, 0.0
  %v129 = vadd.f32 %v127, %v128
  %v130 = vrot.slane %v129, 4
  %v131 = vadd.f32 %v129, %v130
  %v132 = vrot.slane %v131, 2
  %v133 = vadd.f32 %v131, %v132
  %v134 = vrot.slane %v133, 1
  %v135 = vadd.f32 %v133, %v134
  %v136 = vmul.f32 %v135, 0.0625
  %v137 = vmul.f32 %v118, %v118
  %v138 = vmul.f32 %v123, %v123
  %v139 = vsel %vm126, %v137, 0.0
  %v140 = vsel %vm126, %v138, 0.0
  %v141 = vadd.f32 %v139, %v140
  %v142 = vrot.slane %v141, 4
  %v143 = vadd.f32 %v141, %v142
  %v144 = vrot.slane %v143, 2
  %v145 = vadd.f32 %v143, %v144
  %v146 = vrot.slane %v145, 1
  %v147 = vadd.f32 %v145, %v146
  %v148 = vmul.f32 %v147, 0.0625
  %v149 = vmul.f32 %v136, %v136
  %v150 = vsub.f32 %v148, %v149
  %v151 = vld [vmem:[%s3] sm:$0x1]
  %v152 = vadd.f32 %v150, 1e-05
  %v153 = vrsqrt.pop %v152
  %v154 = vmul.f32 %v151, %v153
  %v155 = vld [vmem:[%s4] sm:$0x1]
  %v156 = vmul.f32 %v136, %v154
  %v157 = vsub.f32 %v155, %v156
  %v159 = vlaneseq
  %v160 = vshrl.u32 %v159, 7
  %v161 = vsub.s32 0, %v160
  %v162 = vrot.slane %v154, %v161
  %v164 = vmul.f32 %v118, %v162
  %v165 = vmul.f32 %v123, %v162
  %v167 = vlaneseq
  %v168 = vshrl.u32 %v167, 7
  %v169 = vsub.s32 0, %v168
  %v170 = vrot.slane %v157, %v169
  %v172 = vadd.f32 %v164, %v170
  %v173 = vadd.f32 %v165, %v170
  %v174 = vmax.f32 %v172, 0.0
  %v175 = vmax.f32 %v173, 0.0
  %176 = vst.msk [vmem:[#allocation2] sm:$0xff] %vm126, %v174
  %177 = vst.msk [vmem:[#allocation2 + $0x8] sm:$0xff] %vm126, %v175
  %178 = vst [vmem:[#allocation3] sm:$0xff] 0.0
  %179 = vst [vmem:[#allocation3 + $0x8] sm:$0xff] 0.0
  %180 = vst [vmem:[#allocation3 + $0x10] sm:$0xff] 0.0
  %181 = vst [vmem:[#allocation3 + $0x18] sm:$0xff] 0.0
  %v182 = vld [vmem:[#allocation2] sm:$0x3]
  %vm183 = vcmask 517120
  %184 = vst.msk [vmem:[#allocation3] sm:$0x3] %vm183, %v182
  %v185 = vld [vmem:[#allocation2 + $0x2] sm:$0x3]
  %187 = vrot.lane.b32.xlu0 %v185, 64
  %v188 = vpop.permute.xlu0 %187
  %vm190 = vcmask 1041920
  %191 = vst.msk [vmem:[#allocation3] sm:$0x3] %vm190, %v188
  %v192 = vld [vmem:[#allocation2 + $0x4] sm:$0x3]
  %193 = vst.msk [vmem:[#allocation3 + $0x8] sm:$0x3] %vm183, %v192
  %v194 = vld [vmem:[#allocation2 + $0x6] sm:$0x3]
  %196 = vrot.lane.b32.xlu0 %v194, 64
  %v197 = vpop.permute.xlu0 %196
  %199 = vst.msk [vmem:[#allocation3 + $0x8] sm:$0x3] %vm190, %v197
  %v200 = vld [vmem:[#allocation2 + $0x8] sm:$0x3]
  %201 = vst.msk [vmem:[#allocation3 + $0x10] sm:$0x3] %vm183, %v200
  %v202 = vld [vmem:[#allocation2 + $0xa] sm:$0x3]
  %204 = vrot.lane.b32.xlu0 %v202, 64
  %v205 = vpop.permute.xlu0 %204
  %207 = vst.msk [vmem:[#allocation3 + $0x10] sm:$0x3] %vm190, %v205
  %v208 = vld [vmem:[#allocation2 + $0xc] sm:$0x3]
  %209 = vst.msk [vmem:[#allocation3 + $0x18] sm:$0x3] %vm183, %v208
  %v210 = vld [vmem:[#allocation2 + $0xe] sm:$0x3]
  %212 = vrot.lane.b32.xlu0 %v210, 64
  %v213 = vpop.permute.xlu0 %212
  %215 = vst.msk [vmem:[#allocation3 + $0x18] sm:$0x3] %vm190, %v213
  %v216 = vld [vmem:[#allocation3] sm:$0xff]
  %v217 = vld [vmem:[#allocation3 + $0x8] sm:$0xff]
  %v218 = vld [vmem:[#allocation3 + $0x10] sm:$0xff]
  %v219 = vld [vmem:[#allocation3 + $0x18] sm:$0xff]
  %v220 = vld [vmem:[%s5] sm:$0xff]
  %v221 = vld [vmem:[%s5 + $0x8] sm:$0xff]
  %v222 = vld [vmem:[%s5 + $0x10] sm:$0xff]
  %v223 = vld [vmem:[%s5 + $0x18] sm:$0xff]
  %v224 = vld [vmem:[%s5 + $0x20] sm:$0xff]
  %v225 = vld [vmem:[%s5 + $0x28] sm:$0xff]
  %v226 = vld [vmem:[%s5 + $0x30] sm:$0xff]
  %v227 = vld [vmem:[%s5 + $0x38] sm:$0xff]
  %v228 = vld [vmem:[%s5 + $0x40] sm:$0xff]
  %v229 = vld [vmem:[%s5 + $0x48] sm:$0xff]
  %v230 = vld [vmem:[%s5 + $0x50] sm:$0xff]
  %v231 = vld [vmem:[%s5 + $0x58] sm:$0xff]
  %v232 = vld [vmem:[%s5 + $0x60] sm:$0xff]
  %v233 = vld [vmem:[%s5 + $0x68] sm:$0xff]
  %v234 = vld [vmem:[%s5 + $0x70] sm:$0xff]
  %v235 = vld [vmem:[%s5 + $0x78] sm:$0xff]
  %v236 = vld [vmem:[%s5 + $0x80] sm:$0xff]
  %v237 = vld [vmem:[%s5 + $0x88] sm:$0xff]
  %v238 = vld [vmem:[%s5 + $0x90] sm:$0xff]
  %v239 = vld [vmem:[%s5 + $0x98] sm:$0xff]
  %v240 = vld [vmem:[%s5 + $0xa0] sm:$0xff]
  %v241 = vld [vmem:[%s5 + $0xa8] sm:$0xff]
  %v242 = vld [vmem:[%s5 + $0xb0] sm:$0xff]
  %v243 = vld [vmem:[%s5 + $0xb8] sm:$0xff]
  %v244 = vld [vmem:[%s5 + $0xc0] sm:$0xff]
  %v245 = vld [vmem:[%s5 + $0xc8] sm:$0xff]
  %v246 = vld [vmem:[%s5 + $0xd0] sm:$0xff]
  %v247 = vld [vmem:[%s5 + $0xd8] sm:$0xff]
  %v248 = vld [vmem:[%s5 + $0xe0] sm:$0xff]
  %v249 = vld [vmem:[%s5 + $0xe8] sm:$0xff]
  %v250 = vld [vmem:[%s5 + $0xf0] sm:$0xff]
  %v251 = vld [vmem:[%s5 + $0xf8] sm:$0xff]
  %v252 = vld [vmem:[%s5 + $0x100] sm:$0xff]
  %v253 = vld [vmem:[%s5 + $0x108] sm:$0xff]
  %v254 = vld [vmem:[%s5 + $0x110] sm:$0xff]
  %v255 = vld [vmem:[%s5 + $0x118] sm:$0xff]
  %v256 = vld [vmem:[%s5 + $0x120] sm:$0xff]
  %v257 = vld [vmem:[%s5 + $0x128] sm:$0xff]
  %v258 = vld [vmem:[%s5 + $0x130] sm:$0xff]
  %v259 = vld [vmem:[%s5 + $0x138] sm:$0xff]
  %v260 = vld [vmem:[%s5 + $0x140] sm:$0xff]
  %v261 = vld [vmem:[%s5 + $0x148] sm:$0xff]
  %v262 = vld [vmem:[%s5 + $0x150] sm:$0xff]
  %v263 = vld [vmem:[%s5 + $0x158] sm:$0xff]
  %v264 = vld [vmem:[%s5 + $0x160] sm:$0xff]
  %v265 = vld [vmem:[%s5 + $0x168] sm:$0xff]
  %v266 = vld [vmem:[%s5 + $0x170] sm:$0xff]
  %v267 = vld [vmem:[%s5 + $0x178] sm:$0xff]
  %v268 = vld [vmem:[%s5 + $0x180] sm:$0xff]
  %v269 = vld [vmem:[%s5 + $0x188] sm:$0xff]
  %v270 = vld [vmem:[%s5 + $0x190] sm:$0xff]
  %v271 = vld [vmem:[%s5 + $0x198] sm:$0xff]
  %v272 = vld [vmem:[%s5 + $0x1a0] sm:$0xff]
  %v273 = vld [vmem:[%s5 + $0x1a8] sm:$0xff]
  %v274 = vld [vmem:[%s5 + $0x1b0] sm:$0xff]
  %v275 = vld [vmem:[%s5 + $0x1b8] sm:$0xff]
  %v276 = vld [vmem:[%s5 + $0x1c0] sm:$0xff]
  %v277 = vld [vmem:[%s5 + $0x1c8] sm:$0xff]
  %v278 = vld [vmem:[%s5 + $0x1d0] sm:$0xff]
  %v279 = vld [vmem:[%s5 + $0x1d8] sm:$0xff]
  %v280 = vld [vmem:[%s5 + $0x1e0] sm:$0xff]
  %v281 = vld [vmem:[%s5 + $0x1e8] sm:$0xff]
  %v282 = vld [vmem:[%s5 + $0x1f0] sm:$0xff]
  %v283 = vld [vmem:[%s5 + $0x1f8] sm:$0xff]
  %v284 = vld [vmem:[%s6] sm:$0x1]
  %v286 = vlaneseq
  %v287 = vshrl.u32 %v286, 7
  %v288 = vsub.s32 0, %v287
  %v289 = vrot.slane %v284, %v288
  %291 = vmatprep.subr.mxu0 0.0
  %292 = vmatpush1.msra.mxu0 %v220
  %293 = vmatprep.subr.mxu0 0.0
  %294 = vmatpush1.msra.mxu0 %v221
  %295 = vmatprep.subr.mxu0 0.0
  %296 = vmatpush1.msra.mxu0 %v222
  %297 = vmatprep.subr.mxu0 0.0
  %298 = vmatpush1.msra.mxu0 %v223
  %299 = vmatprep.subr.mxu0 0.0
  %300 = vmatpush1.msra.mxu0 %v224
  %301 = vmatprep.subr.mxu0 0.0
  %302 = vmatpush1.msra.mxu0 %v225
  %303 = vmatprep.subr.mxu0 0.0
  %304 = vmatpush1.msra.mxu0 %v226
  %305 = vmatprep.subr.mxu0 0.0
  %306 = vmatpush1.msra.mxu0 %v227
  %307 = vmatprep.subr.mxu0 0.0
  %308 = vmatpush1.msra.mxu0 %v228
  %309 = vmatprep.subr.mxu0 0.0
  %310 = vmatpush1.msra.mxu0 %v229
  %311 = vmatprep.subr.mxu0 0.0
  %312 = vmatpush1.msra.mxu0 %v230
  %313 = vmatprep.subr.mxu0 0.0
  %314 = vmatpush1.msra.mxu0 %v231
  %315 = vmatprep.subr.mxu0 0.0
  %316 = vmatpush1.msra.mxu0 %v232
  %317 = vmatprep.subr.mxu0 0.0
  %318 = vmatpush1.msra.mxu0 %v233
  %319 = vmatprep.subr.mxu0 0.0
  %320 = vmatpush1.msra.mxu0 %v234
  %321 = vmatprep.subr.mxu0 0.0
  %322 = vmatpush1.msra.mxu0 %v235
  %323 = vmatprep.subr.mxu0 0.0
  %324 = vmatpush1.msra.mxu0 %v236
  %325 = vmatprep.subr.mxu0 0.0
  %326 = vmatpush1.msra.mxu0 %v237
  %327 = vmatprep.subr.mxu0 0.0
  %328 = vmatpush1.msra.mxu0 %v238
  %329 = vmatprep.subr.mxu0 0.0
  %330 = vmatpush1.msra.mxu0 %v239
  %331 = vmatprep.subr.mxu0 0.0
  %332 = vmatpush1.msra.mxu0 %v240
  %333 = vmatprep.subr.mxu0 0.0
  %334 = vmatpush1.msra.mxu0 %v241
  %335 = vmatprep.subr.mxu0 0.0
  %336 = vmatpush1.msra.mxu0 %v242
  %337 = vmatprep.subr.mxu0 0.0
  %338 = vmatpush1.msra.mxu0 %v243
  %339 = vmatprep.subr.mxu0 0.0
  %340 = vmatpush1.msra.mxu0 %v244
  %341 = vmatprep.subr.mxu0 0.0
  %342 = vmatpush1.msra.mxu0 %v245
  %343 = vmatprep.subr.mxu0 0.0
  %344 = vmatpush1.msra.mxu0 %v246
  %345 = vmatprep.subr.mxu0 0.0
  %346 = vmatpush1.msra.mxu0 %v247
  %347 = vmatprep.subr.mxu0 0.0
  %348 = vmatpush1.msra.mxu0 %v248
  %349 = vmatprep.subr.mxu0 0.0
  %350 = vmatpush1.msra.mxu0 %v249
  %351 = vmatprep.subr.mxu0 0.0
  %352 = vmatpush1.msra.mxu0 %v250
  %353 = vmatprep.subr.mxu0 0.0
  %354 = vmatpush1.msra.mxu0 %v251
  %355 = vmatprep.mubr.f32.mxu0 %v217
  %356 = vmatmul.mubr.f32.gmra.mrb[0].mxu0 %v216
  %v357 = vpop.f32.mrb[0].mxu0
  %v358 = vadd.f32 %v289, %v357
  %v359 = vpop.f32.mrb[0].mxu0
  %360 = vdwg.mxu0
  %361 = vmatprep.subr.mxu0 0.0
  %362 = vmatpush1.msra.mxu0 %v252
  %363 = vmatprep.subr.mxu0 0.0
  %364 = vmatpush1.msra.mxu0 %v253
  %365 = vmatprep.subr.mxu0 0.0
  %366 = vmatpush1.msra.mxu0 %v254
  %367 = vmatprep.subr.mxu0 0.0
  %368 = vmatpush1.msra.mxu0 %v255
  %369 = vmatprep.subr.mxu0 0.0
  %370 = vmatpush1.msra.mxu0 %v256
  %371 = vmatprep.subr.mxu0 0.0
  %372 = vmatpush1.msra.mxu0 %v257
  %373 = vmatprep.subr.mxu0 0.0
  %374 = vmatpush1.msra.mxu0 %v258
  %375 = vmatprep.subr.mxu0 0.0
  %376 = vmatpush1.msra.mxu0 %v259
  %377 = vmatprep.subr.mxu0 0.0
  %378 = vmatpush1.msra.mxu0 %v260
  %379 = vmatprep.subr.mxu0 0.0
  %380 = vmatpush1.msra.mxu0 %v261
  %381 = vmatprep.subr.mxu0 0.0
  %382 = vmatpush1.msra.mxu0 %v262
  %383 = vmatprep.subr.mxu0 0.0
  %384 = vmatpush1.msra.mxu0 %v263
  %385 = vmatprep.subr.mxu0 0.0
  %386 = vmatpush1.msra.mxu0 %v264
  %387 = vmatprep.subr.mxu0 0.0
  %388 = vmatpush1.msra.mxu0 %v265
  %389 = vmatprep.subr.mxu0 0.0
  %390 = vmatpush1.msra.mxu0 %v266
  %391 = vmatprep.subr.mxu0 0.0
  %392 = vmatpush1.msra.mxu0 %v267
  %393 = vmatprep.subr.mxu0 0.0
  %394 = vmatpush1.msra.mxu0 %v268
  %395 = vmatprep.subr.mxu0 0.0
  %396 = vmatpush1.msra.mxu0 %v269
  %397 = vmatprep.subr.mxu0 0.0
  %398 = vmatpush1.msra.mxu0 %v270
  %399 = vmatprep.subr.mxu0 0.0
  %400 = vmatpush1.msra.mxu0 %v271
  %401 = vmatprep.subr.mxu0 0.0
  %402 = vmatpush1.msra.mxu0 %v272
  %403 = vmatprep.subr.mxu0 0.0
  %404 = vmatpush1.msra.mxu0 %v273
  %405 = vmatprep.subr.mxu0 0.0
  %406 = vmatpush1.msra.mxu0 %v274
  %407 = vmatprep.subr.mxu0 0.0
  %408 = vmatpush1.msra.mxu0 %v275
  %409 = vmatprep.subr.mxu0 0.0
  %410 = vmatpush1.msra.mxu0 %v276
  %411 = vmatprep.subr.mxu0 0.0
  %412 = vmatpush1.msra.mxu0 %v277
  %413 = vmatprep.subr.mxu0 0.0
  %414 = vmatpush1.msra.mxu0 %v278
  %415 = vmatprep.subr.mxu0 0.0
  %416 = vmatpush1.msra.mxu0 %v279
  %417 = vmatprep.subr.mxu0 0.0
  %418 = vmatpush1.msra.mxu0 %v280
  %419 = vmatprep.subr.mxu0 0.0
  %420 = vmatpush1.msra.mxu0 %v281
  %421 = vmatprep.subr.mxu0 0.0
  %422 = vmatpush1.msra.mxu0 %v282
  %423 = vmatprep.subr.mxu0 0.0
  %424 = vmatpush1.msra.mxu0 %v283
  %425 = vmatprep.mubr.f32.mxu0 %v219
  %426 = vmatmul.mubr.f32.gmra.mrb[0].mxu0 %v218
  %v427 = vpop.f32.mrb[0].mxu0
  %v428 = vadd.f32 %v358, %v427
  %v429 = vpop.f32.mrb[0].mxu0
  %430 = vdwg.mxu0
  %431 = vst [vmem:[%s7] sm:$0xff] %v428
  // Predicated region
  $region30: #{vgg_forward.1} parent=0 // pred_check
    _
  $region31: #{vgg_forward.1} parent=0 // pred_check_branch
    %433 = sbr.rel (0) target = $region33
  $region32: #{vgg_forward.1} parent=0 // pred_region
    _
  $region33: #{vgg_forward.1} parent=0 // pred_fallthru
    _
  // Predicated region
  $region34: #{vgg_forward.1} parent=0 // pred_check
    _
  $region35: #{vgg_forward.1} parent=0 // pred_check_branch
    %435 = sbr.rel (0) target = $region37
  $region36: #{vgg_forward.1} parent=0 // pred_region
    _
  $region37: #{vgg_forward.1} parent=0 // pred_fallthru
    _

</llo_original>
